<compile_context>
chip_gen: v6e
topology: v6e:2x2x1
jax: 0.10.0
libtpu: 0.0.40
codegen_flags: <defaults>
</compile_context>

<pallas_src>
import jax
import jax.numpy as jnp
from jax.experimental import pallas as pl
from jax.experimental.pallas import tpu as pltpu

LANE = 128            # TPU lane width; hidden feature dims are padded to this
NEG_BIG = -1e30       # padded logit lanes -> exp underflows to exactly 0
TB_MAX = 2048         # batch-tile cap (2048*128*4B << any chip's VMEM budget)


def _round_up(x, m):
    return ((x + m - 1) // m) * m


def actor_kernel(x_ref, w1_ref, b1_ref, w2_ref, b2_ref, w3_ref, b3_ref,
                 probs_ref):
    # Inputs to the MXU in bf16 (native on v6e/v7x), accumulate in f32.
    x = x_ref[...].astype(jnp.bfloat16)                           # [TB, S]
    # linear1 + ReLU (padded hidden lanes stay exactly 0: relu(0*w + 0) = 0)
    h1 = jnp.dot(x, w1_ref[...], preferred_element_type=jnp.float32) + b1_ref[...]
    h1 = jnp.maximum(h1, 0.0)                                     # [TB, 128] f32
    # linear2 + ReLU
    h2 = jnp.dot(h1.astype(jnp.bfloat16), w2_ref[...],
                 preferred_element_type=jnp.float32) + b2_ref[...]
    h2 = jnp.maximum(h2, 0.0)                                     # [TB, 128] f32
    # linear3 (logits); padded lanes have zero weights and bias -1e30
    logits = jnp.dot(h2.astype(jnp.bfloat16), w3_ref[...],
                     preferred_element_type=jnp.float32) + b3_ref[...]  # [TB, OUT_PAD]
    # numerically-stable softmax over the (padded) last axis; exact divide so
    # probability rows sum to 1 to f32 rounding.
    m = jnp.max(logits, axis=-1, keepdims=True)
    e = jnp.exp(logits - m)
    denom = jnp.sum(e, axis=-1, keepdims=True)
    probs_ref[...] = e / denom


def _pad2(a, rows, cols, fill=0.0):
    """Embed 2-D array `a` into the top-left of a (rows, cols) array of `fill`."""
    out = jnp.full((rows, cols), fill, dtype=a.dtype)
    return out.at[:a.shape[0], :a.shape[1]].set(a)


def prepare_params(params, state_size):
    """Pad nn.Linear-shaped params; weights -> bf16, biases stay f32. Call once."""
    w1, b1, w2, b2, w3, b3 = params
    out_dim = w3.shape[1]
    out_pad = max(8, _round_up(out_dim, 8))          # lane-padded logit width
    w1p = _pad2(w1, state_size, LANE).astype(jnp.bfloat16)
    b1p = _pad2(b1, 1, LANE)
    w2p = _pad2(w2, LANE, LANE).astype(jnp.bfloat16)
    b2p = _pad2(b2, 1, LANE)
    w3p = _pad2(w3, LANE, out_pad).astype(jnp.bfloat16)
    b3p = _pad2(b3, 1, out_pad, fill=NEG_BIG)        # padded logits -> -1e30
    return (w1p, b1p, w2p, b2p, w3p, b3p)


def actor_forward(state, padded_params, out_dim):
    """state: [B, state_size] f32 -> probs: [B, out_dim] f32 (rows sum to 1)."""
    w1, b1, w2, b2, w3, b3 = padded_params
    B, S = state.shape
    H = w1.shape[1]            # 128 (padded hidden width)
    OUT_PAD = w3.shape[1]      # round_up(out_dim, 8)

    # Batch tile: as large as reasonable (amortizes ~0.35 us/step overhead) but
    # split into >=2 steps when B is large enough so v7x megacore gets work.
    if B <= 8:
        TB = B
    else:
        TB = min(TB_MAX, _round_up(pl.cdiv(B, 2), 8))
    grid = (pl.cdiv(B, TB),)

    # Advisory cost so XLA can schedule around the tiny custom call.
    flops = 2 * B * (S * H + H * H + H * OUT_PAD)
    bytes_accessed = (4 * (B * S + B * OUT_PAD + b1.size + b2.size + b3.size)
                      + 2 * (w1.size + w2.size + w3.size))
    cost = pl.CostEstimate(flops=flops,
                           transcendentals=B * OUT_PAD,
                           bytes_accessed=bytes_accessed)

    probs_padded = pl.pallas_call(
        actor_kernel,
        out_shape=jax.ShapeDtypeStruct((B, OUT_PAD), jnp.float32),
        grid=grid,
        in_specs=[
            pl.BlockSpec((TB, S), lambda i: (i, 0)),      # state: tiled over batch
            pl.BlockSpec(w1.shape, lambda i: (0, 0)),     # weights/biases resident
            pl.BlockSpec(b1.shape, lambda i: (0, 0)),
            pl.BlockSpec(w2.shape, lambda i: (0, 0)),
            pl.BlockSpec(b2.shape, lambda i: (0, 0)),
            pl.BlockSpec(w3.shape, lambda i: (0, 0)),
            pl.BlockSpec(b3.shape, lambda i: (0, 0)),
        ],
        out_specs=pl.BlockSpec((TB, OUT_PAD), lambda i: (i, 0)),
        compiler_params=pltpu.CompilerParams(
            dimension_semantics=("parallel",)),           # megacore on v7x
        cost_estimate=cost,
    )(state, w1, b1, w2, b2, w3, b3)

    # Drop the padded logit lanes (they carry exactly-zero probability mass).
    return probs_padded[:, :out_dim]


def init_actor_params(key, state_size, action_size):
    """Deterministic synthetic params matching nn.Linear shapes/init (stored [in, out])."""
    ks = jax.random.split(key, 6)

    def linear(kw, kb, fan_in, fan_out):
        bound = 1.0 / jnp.sqrt(fan_in)
        w = jax.random.uniform(kw, (fan_in, fan_out), jnp.float32, -bound, bound)
        b = jax.random.uniform(kb, (1, fan_out), jnp.float32, -bound, bound)
        return w, b

    w1, b1 = linear(ks[0], ks[1], state_size, 16)
    w2, b2 = linear(ks[2], ks[3], 16, 32)
    w3, b3 = linear(ks[4], ks[5], 32, action_size - 1)
    return (w1, b1, w2, b2, w3, b3)


def actor_reference(state, params):
    """Pure-JAX f32 reference of the PyTorch forward (Categorical probs)."""
    w1, b1, w2, b2, w3, b3 = params
    h1 = jax.nn.relu(state @ w1 + b1)
    h2 = jax.nn.relu(h1 @ w2 + b2)
    logits = h2 @ w3 + b3
    return jax.nn.softmax(logits, axis=-1)


if __name__ == "__main__":
    key = jax.random.PRNGKey(0)
    k_params, k_state = jax.random.split(key)

    state_size = 8
    action_size = 5                # Actor outputs action_size - 1 = 4 logits
    batch = 8

    params = init_actor_params(k_params, state_size, action_size)
    padded_params = prepare_params(params, state_size)
    state = jax.random.normal(k_state, (batch, state_size), dtype=jnp.float32)

    probs = actor_forward(state, padded_params, action_size - 1)
    probs = jax.block_until_ready(probs)

    # sanity: shape, Categorical prob rows sum to 1 (exact divide), and match
    # the f32 reference (tolerance covers the bf16 matmul inputs).
    assert probs.shape == (batch, action_size - 1)
    assert jnp.allclose(jnp.sum(probs, axis=-1), 1.0, atol=1e-3)
    ref = actor_reference(state, params)
    assert jnp.allclose(probs, ref, atol=2e-2, rtol=2e-2)

    # TODO(synk): torch.distributions.Categorical sampling/log_prob are not part
    # of the kernel; fusing sampling (pltpu.prng_random_bits + cumulative
    # compare over the <=8 valid lanes) would shrink output traffic further.

    print("KERNEL_OK")
</pallas_src>

<mosaic_0001>
module attributes {stable_mosaic.version = 11 : i64} {
  func.func @actor_kernel(%arg0: i32, %arg1: memref<8x8xf32, #tpu.memory_space<vmem>>, %arg2: memref<8x128xbf16, #tpu.memory_space<vmem>>, %arg3: memref<1x128xf32, #tpu.memory_space<vmem>>, %arg4: memref<128x128xbf16, #tpu.memory_space<vmem>>, %arg5: memref<1x128xf32, #tpu.memory_space<vmem>>, %arg6: memref<128x8xbf16, #tpu.memory_space<vmem>>, %arg7: memref<1x8xf32, #tpu.memory_space<vmem>>, %arg8: memref<8x8xf32, #tpu.memory_space<vmem>>) attributes {dimension_semantics = [#tpu.dimension_semantics<parallel>], iteration_bounds = array<i64: 1>, scalar_prefetch = 0 : i64, scratch_operands = 0 : i64, tpu.core_type = #tpu.core_type<tc>, window_params = [{transform_indices = @transform_0, window_bounds = array<i64: 8, 8>}, {pipeline_mode = #tpu.pipeline_mode<synchronous>, transform_indices = @transform_1, window_bounds = array<i64: 8, 128>}, {pipeline_mode = #tpu.pipeline_mode<synchronous>, transform_indices = @transform_2, window_bounds = array<i64: 1, 128>}, {pipeline_mode = #tpu.pipeline_mode<synchronous>, transform_indices = @transform_3, window_bounds = array<i64: 128, 128>}, {pipeline_mode = #tpu.pipeline_mode<synchronous>, transform_indices = @transform_4, window_bounds = array<i64: 1, 128>}, {pipeline_mode = #tpu.pipeline_mode<synchronous>, transform_indices = @transform_5, window_bounds = array<i64: 128, 8>}, {pipeline_mode = #tpu.pipeline_mode<synchronous>, transform_indices = @transform_6, window_bounds = array<i64: 1, 8>}, {transform_indices = @transform_7, window_bounds = array<i64: 8, 8>}]} {
    %c0 = arith.constant 0 : index
    %c0_0 = arith.constant 0 : index
    %0 = vector.load %arg1[%c0, %c0_0] : memref<8x8xf32, #tpu.memory_space<vmem>>, vector<8x8xf32>
    %1 = arith.truncf %0 : vector<8x8xf32> to vector<8x8xbf16>
    %c0_1 = arith.constant 0 : index
    %c0_2 = arith.constant 0 : index
    %2 = vector.load %arg2[%c0_1, %c0_2] : memref<8x128xbf16, #tpu.memory_space<vmem>>, vector<8x128xbf16>
    %cst = arith.constant dense<0.000000e+00> : vector<8x128xf32>
    %3 = tpu.matmul %1, %2, %cst {dimension_numbers = #tpu.dot_dimension_numbers<[1], [0], [0], [1], [0, 0, 1, 1], [], []>} : vector<8x8xbf16>, vector<8x128xbf16>, vector<8x128xf32> -> vector<8x128xf32>
    %c0_3 = arith.constant 0 : index
    %c0_4 = arith.constant 0 : index
    %4 = vector.load %arg3[%c0_3, %c0_4] : memref<1x128xf32, #tpu.memory_space<vmem>>, vector<1x128xf32>
    %5 = vector.broadcast %4 : vector<1x128xf32> to vector<8x128xf32>
    %6 = arith.addf %3, %5 : vector<8x128xf32>
    %cst_5 = arith.constant 0.000000e+00 : f32
    %7 = vector.broadcast %cst_5 : f32 to vector<8x128xf32>
    %8 = arith.maximumf %6, %7 : vector<8x128xf32>
    %9 = arith.truncf %8 : vector<8x128xf32> to vector<8x128xbf16>
    %c0_6 = arith.constant 0 : index
    %c0_7 = arith.constant 0 : index
    %10 = vector.load %arg4[%c0_6, %c0_7] : memref<128x128xbf16, #tpu.memory_space<vmem>>, vector<128x128xbf16>
    %cst_8 = arith.constant dense<0.000000e+00> : vector<8x128xf32>
    %11 = tpu.matmul %9, %10, %cst_8 {dimension_numbers = #tpu.dot_dimension_numbers<[1], [0], [0], [1], [0, 0, 1, 1], [], []>} : vector<8x128xbf16>, vector<128x128xbf16>, vector<8x128xf32> -> vector<8x128xf32>
    %c0_9 = arith.constant 0 : index
    %c0_10 = arith.constant 0 : index
    %12 = vector.load %arg5[%c0_9, %c0_10] : memref<1x128xf32, #tpu.memory_space<vmem>>, vector<1x128xf32>
    %13 = vector.broadcast %12 : vector<1x128xf32> to vector<8x128xf32>
    %14 = arith.addf %11, %13 : vector<8x128xf32>
    %cst_11 = arith.constant 0.000000e+00 : f32
    %15 = vector.broadcast %cst_11 : f32 to vector<8x128xf32>
    %16 = arith.maximumf %14, %15 : vector<8x128xf32>
    %17 = arith.truncf %16 : vector<8x128xf32> to vector<8x128xbf16>
    %c0_12 = arith.constant 0 : index
    %c0_13 = arith.constant 0 : index
    %18 = vector.load %arg6[%c0_12, %c0_13] : memref<128x8xbf16, #tpu.memory_space<vmem>>, vector<128x8xbf16>
    %cst_14 = arith.constant dense<0.000000e+00> : vector<8x8xf32>
    %19 = tpu.matmul %17, %18, %cst_14 {dimension_numbers = #tpu.dot_dimension_numbers<[1], [0], [0], [1], [0, 0, 1, 1], [], []>} : vector<8x128xbf16>, vector<128x8xbf16>, vector<8x8xf32> -> vector<8x8xf32>
    %c0_15 = arith.constant 0 : index
    %c0_16 = arith.constant 0 : index
    %20 = vector.load %arg7[%c0_15, %c0_16] : memref<1x8xf32, #tpu.memory_space<vmem>>, vector<1x8xf32>
    %21 = vector.broadcast %20 : vector<1x8xf32> to vector<8x8xf32>
    %22 = arith.addf %19, %21 : vector<8x8xf32>
    %cst_17 = arith.constant dense<0xFF800000> : vector<8xf32>
    %23 = vector.multi_reduction <maximumf>, %22, %cst_17 [1] : vector<8x8xf32> to vector<8xf32>
    %24 = vector.shape_cast %23 : vector<8xf32> to vector<8x1xf32>
    %25 = vector.broadcast %24 : vector<8x1xf32> to vector<8x8xf32>
    %26 = arith.subf %22, %25 : vector<8x8xf32>
    %27 = math.exp %26 : vector<8x8xf32>
    %cst_18 = arith.constant dense<0.000000e+00> : vector<8xf32>
    %28 = vector.multi_reduction <add>, %27, %cst_18 [1] : vector<8x8xf32> to vector<8xf32>
    %29 = vector.shape_cast %28 : vector<8xf32> to vector<8x1xf32>
    %30 = vector.broadcast %29 : vector<8x1xf32> to vector<8x8xf32>
    %31 = arith.divf %27, %30 : vector<8x8xf32>
    %c0_19 = arith.constant 0 : index
    %c0_20 = arith.constant 0 : index
    %32 = vector.load %arg8[%c0_19, %c0_20] : memref<8x8xf32, #tpu.memory_space<vmem>>, vector<8x8xf32>
    tpu.vector_store %arg8[%c0_19, %c0_20], %31 {strides = array<i32>} : memref<8x8xf32, #tpu.memory_space<vmem>>, vector<8x8xf32>,
    return
  }
  func.func @transform_0(%arg0: i32) -> (i32, i32) {
    %c0_i32 = arith.constant 0 : i32
    %c0_i32_0 = arith.constant 0 : i32
    return %arg0, %c0_i32 : i32, i32
  }
  func.func @transform_1(%arg0: i32) -> (i32, i32) {
    %c0_i32 = arith.constant 0 : i32
    %c0_i32_0 = arith.constant 0 : i32
    %c0_i32_1 = arith.constant 0 : i32
    return %c0_i32, %c0_i32_0 : i32, i32
  }
  func.func @transform_2(%arg0: i32) -> (i32, i32) {
    %c0_i32 = arith.constant 0 : i32
    %c0_i32_0 = arith.constant 0 : i32
    %c0_i32_1 = arith.constant 0 : i32
    return %c0_i32, %c0_i32_0 : i32, i32
  }
  func.func @transform_3(%arg0: i32) -> (i32, i32) {
    %c0_i32 = arith.constant 0 : i32
    %c0_i32_0 = arith.constant 0 : i32
    %c0_i32_1 = arith.constant 0 : i32
    return %c0_i32, %c0_i32_0 : i32, i32
  }
  func.func @transform_4(%arg0: i32) -> (i32, i32) {
    %c0_i32 = arith.constant 0 : i32
    %c0_i32_0 = arith.constant 0 : i32
    %c0_i32_1 = arith.constant 0 : i32
    return %c0_i32, %c0_i32_0 : i32, i32
  }
  func.func @transform_5(%arg0: i32) -> (i32, i32) {
    %c0_i32 = arith.constant 0 : i32
    %c0_i32_0 = arith.constant 0 : i32
    %c0_i32_1 = arith.constant 0 : i32
    return %c0_i32, %c0_i32_0 : i32, i32
  }
  func.func @transform_6(%arg0: i32) -> (i32, i32) {
    %c0_i32 = arith.constant 0 : i32
    %c0_i32_0 = arith.constant 0 : i32
    %c0_i32_1 = arith.constant 0 : i32
    return %c0_i32, %c0_i32_0 : i32, i32
  }
  func.func @transform_7(%arg0: i32) -> (i32, i32) {
    %c0_i32 = arith.constant 0 : i32
    %c0_i32_0 = arith.constant 0 : i32
    return %arg0, %c0_i32 : i32, i32
  }
}

</mosaic_0001>

<llo_original>
// kernel: tpu_custom_call.1
$region0: #{tpu_custom_call.1}
  #allocation0 [shape = 'u32[]', space=smem, size = 0x4, offset = 0x4, fixed_abs, tag = 'smem constant byte address 0x4 - core index']
  #allocation1 [shape = 'u32[144,128]{1,0:T(1,128)}', space=vmem, size = 0x12000, scoped, tag = 'internal scratch']
  %s0 = inlined_call_operand.vmem [shape: f32[8,8], index: 0, kind: input, shape index: {}]
  %s1 = inlined_call_operand.hbm [shape: bf16[8,128], index: 1, kind: input, shape index: {}]
  %s2 = inlined_call_operand.vmem [shape: f32[1,128], index: 2, kind: input, shape index: {}]
  %s3 = inlined_call_operand.vmem [shape: bf16[128,128], index: 3, kind: input, shape index: {}]
  %s4 = inlined_call_operand.hbm [shape: f32[1,128], index: 4, kind: input, shape index: {}]
  %s5 = inlined_call_operand.vmem [shape: bf16[128,8], index: 5, kind: input, shape index: {}]
  %s6 = inlined_call_operand.vmem [shape: f32[1,8], index: 6, kind: input, shape index: {}]
  %s7 = inlined_call_operand.hbm [shape: f32[8,8], index: 7, kind: output, shape index: {}]
  %s8 = sld [smem:[#allocation0]]
  $region46: #{tpu_custom_call.1} parent=0
    _
  %s10 = ssub.s32 1, %s8
  %s11 = scalar_select 0, %s10, %s8
  $region1: #{tpu_custom_call.1} parent=0
    #allocation2 [shape = 'u8[2048]{0}', space=vmem, size = 0x800, scoped, tag = 'input window, operand 1, single buffered']
    #allocation3 [shape = 's32[1]{0}', space=sflag, size = 0x4, scoped, tag = 'scoped memory for tpu_custom_call.1']
    #allocation4 [shape = 's32[1]{0}', space=sflag, size = 0x4, scoped, tag = 'scoped memory for tpu_custom_call.1']
    #allocation5 [shape = 'u8[512]{0}', space=vmem, size = 0x400, scoped, tag = 'input window, operand 4, single buffered']
    #allocation6 [shape = 's32[1]{0}', space=sflag, size = 0x4, scoped, tag = 'scoped memory for tpu_custom_call.1']
    #allocation7 [shape = 'u8[4096]{0}', space=vmem, size = 0x1000, scoped, tag = 'output window, operand 0, single buffered']
    %12 = vsyncpa [#allocation3], 0
    %13 = vsyncpa [#allocation6], 0
    %14 = vsyncpa [#allocation4], 0
    // Predicated region
    $region2: #{tpu_custom_call.1} parent=1 // pred_check
      _
    $region3: #{tpu_custom_call.1} parent=1 // pred_check_branch
      %16 = sbr.rel (0) target = $region5
    $region4: #{tpu_custom_call.1} parent=1 // pred_region
      _
    $region5: #{tpu_custom_call.1} parent=1 // pred_fallthru
      _
    // Predicated region
    $region6: #{tpu_custom_call.1} parent=1 // pred_check
      _
    $region7: #{tpu_custom_call.1} parent=1 // pred_check_branch
      %18 = sbr.rel (0) target = $region9
    $region8: #{tpu_custom_call.1} parent=1 // pred_region
      %s20 = ssub.s32 64, 64
      %21 = vsyncadd [#allocation3], %s20
      %s23 = sshll.u32 [#allocation2], 4
      %s24 = int_to_ptr.vmem [resolvable:$true] %s23
      %26 = dma.hbm_to_vmem [thread:$0]  %s1, 64, %s24, [#allocation3]
    $region9: #{tpu_custom_call.1} parent=1 // pred_fallthru
      _
    // Predicated region
    $region10: #{tpu_custom_call.1} parent=1 // pred_check
      _
    $region11: #{tpu_custom_call.1} parent=1 // pred_check_branch
      %28 = sbr.rel (0) target = $region13
    $region12: #{tpu_custom_call.1} parent=1 // pred_region
      _
    $region13: #{tpu_custom_call.1} parent=1 // pred_fallthru
      _
    // Predicated region
    $region14: #{tpu_custom_call.1} parent=1 // pred_check
      _
    $region15: #{tpu_custom_call.1} parent=1 // pred_check_branch
      %30 = sbr.rel (0) target = $region17
    $region16: #{tpu_custom_call.1} parent=1 // pred_region
      _
    $region17: #{tpu_custom_call.1} parent=1 // pred_fallthru
      _
    // Predicated region
    $region18: #{tpu_custom_call.1} parent=1 // pred_check
      _
    $region19: #{tpu_custom_call.1} parent=1 // pred_check_branch
      %32 = sbr.rel (0) target = $region21
    $region20: #{tpu_custom_call.1} parent=1 // pred_region
      %s34 = ssub.s32 16, 16
      %35 = vsyncadd [#allocation6], %s34
      %s37 = sshll.u32 [#allocation5], 4
      %s38 = int_to_ptr.vmem [resolvable:$true] %s37
      %40 = dma.hbm_to_vmem [thread:$0]  %s4, 16, %s38, [#allocation6]
    $region21: #{tpu_custom_call.1} parent=1 // pred_fallthru
      _
    // Predicated region
    $region22: #{tpu_custom_call.1} parent=1 // pred_check
      _
    $region23: #{tpu_custom_call.1} parent=1 // pred_check_branch
      %42 = sbr.rel (0) target = $region25
    $region24: #{tpu_custom_call.1} parent=1 // pred_region
      _
    $region25: #{tpu_custom_call.1} parent=1 // pred_fallthru
      _
    // Predicated region
    $region26: #{tpu_custom_call.1} parent=1 // pred_check
      _
    $region27: #{tpu_custom_call.1} parent=1 // pred_check_branch
      %44 = sbr.rel (0) target = $region29
    $region28: #{tpu_custom_call.1} parent=1 // pred_region
      _
    $region29: #{tpu_custom_call.1} parent=1 // pred_fallthru
      _
    // Predicated region
    $region30: #{tpu_custom_call.1} parent=1 // pred_check
      _
    $region31: #{tpu_custom_call.1} parent=1 // pred_check_branch
      %46 = sbr.rel (0) target = $region33
    $region32: #{tpu_custom_call.1} parent=1 // pred_region
      %47 = dma.done [#allocation3], 64
    $region33: #{tpu_custom_call.1} parent=1 // pred_fallthru
      _
    // Predicated region
    $region34: #{tpu_custom_call.1} parent=1 // pred_check
      _
    $region35: #{tpu_custom_call.1} parent=1 // pred_check_branch
      %49 = sbr.rel (0) target = $region37
    $region36: #{tpu_custom_call.1} parent=1 // pred_region
      %50 = dma.done [#allocation6], 16
    $region37: #{tpu_custom_call.1} parent=1 // pred_fallthru
      _
    %v52 = vld [vmem:[%s0] sm:$0xff]
    %v53 = vpack.c.bf16 %v52, %v52
    %v54 = vld [vmem:[#allocation2] sm:$0xf]
    %v55 = vld [vmem:[%s2] sm:$0x1]
    %v57 = vlaneseq
    %v58 = vshrl.u32 %v57, 7
    %v59 = vsub.s32 0, %v58
    %v60 = vrot.slane %v55, %v59
    %vm62 = vcmask 64512
    %v64 = vsel %vm62, %v53, 0
    %vm66 = vcmask 1043456
    %v68 = vsel %vm66, %v54, 0
    %70 = vmatprep.subr.bf16.mxu0 0
    %71 = vmatpush1.bf16.msra.mxu0 0
    %72 = vmatprep.subr.bf16.mxu0 0
    %73 = vmatpush1.bf16.msra.mxu0 0
    %74 = vmatprep.subr.bf16.mxu0 0
    %75 = vmatpush1.bf16.msra.mxu0 0
    %76 = vmatprep.subr.bf16.mxu0 0
    %77 = vmatpush1.bf16.msra.mxu0 0
    %78 = vmatprep.subr.bf16.mxu0 0
    %79 = vmatpush1.bf16.msra.mxu0 0
    %80 = vmatprep.subr.bf16.mxu0 0
    %81 = vmatpush1.bf16.msra.mxu0 0
    %82 = vmatprep.subr.bf16.mxu0 0
    %83 = vmatpush1.bf16.msra.mxu0 0
    %84 = vmatprep.subr.bf16.mxu0 0
    %85 = vmatpush1.bf16.msra.mxu0 %v68
    %86 = vmatprep.subr.bf16.mxu0 0
    %87 = vmatpush2.bf16.msra.mxu0 0
    %88 = vmatprep.subr.bf16.mxu0 0
    %89 = vmatpush2.bf16.msra.mxu0 0
    %90 = vmatprep.subr.bf16.mxu0 0
    %91 = vmatpush2.bf16.msra.mxu0 0
    %92 = vmatprep.subr.bf16.mxu0 0
    %93 = vmatpush2.bf16.msra.mxu0 0
    %94 = vmatprep.subr.bf16.mxu0 0
    %95 = vmatpush2.bf16.msra.mxu0 0
    %96 = vmatprep.subr.bf16.mxu0 0
    %97 = vmatpush2.bf16.msra.mxu0 0
    %98 = vmatprep.subr.bf16.mxu0 0
    %99 = vmatpush2.bf16.msra.mxu0 0
    %100 = vmatprep.subr.bf16.mxu0 0
    %101 = vmatpush2.bf16.msra.mxu0 0
    %102 = vmatprep.mubr.bf16.mxu0 0
    %103 = vmatmul.mubr.bf16.gmra.mxu0 %v64
    %v104 = vpop.f32.mrf.mxu0
    %v105 = vadd.f32 %v60, %v104
    %v106 = vpop.f32.mrf.mxu0
    %v107 = vpop.f32.mrf.mxu0
    %v108 = vpop.f32.mrf.mxu0
    %109 = vdwg.mxu0
    %v110 = vmax.f32 %v105, 0.0
    %v111 = vpack.c.bf16 %v110, %v110
    %v112 = vld [vmem:[%s3] sm:$0xf]
    %v113 = vld [vmem:[%s3 + $0x4] sm:$0xf]
    %v114 = vld [vmem:[%s3 + $0x8] sm:$0xf]
    %v115 = vld [vmem:[%s3 + $0xc] sm:$0xf]
    %v116 = vld [vmem:[%s3 + $0x10] sm:$0xf]
    %v117 = vld [vmem:[%s3 + $0x14] sm:$0xf]
    %v118 = vld [vmem:[%s3 + $0x18] sm:$0xf]
    %v119 = vld [vmem:[%s3 + $0x1c] sm:$0xf]
    %v120 = vld [vmem:[%s3 + $0x20] sm:$0xf]
    %v121 = vld [vmem:[%s3 + $0x24] sm:$0xf]
    %v122 = vld [vmem:[%s3 + $0x28] sm:$0xf]
    %v123 = vld [vmem:[%s3 + $0x2c] sm:$0xf]
    %v124 = vld [vmem:[%s3 + $0x30] sm:$0xf]
    %v125 = vld [vmem:[%s3 + $0x34] sm:$0xf]
    %v126 = vld [vmem:[%s3 + $0x38] sm:$0xf]
    %v127 = vld [vmem:[%s3 + $0x3c] sm:$0xf]
    %v128 = vld [vmem:[#allocation5] sm:$0x1]
    %v130 = vlaneseq
    %v131 = vshrl.u32 %v130, 7
    %v132 = vsub.s32 0, %v131
    %v133 = vrot.slane %v128, %v132
    %v151 = vunpack.c.l.b16 %v112
    %v152 = vunpack.c.l.b16 %v113
    %v153 = vunpack.c.l.b16 %v114
    %v154 = vunpack.c.l.b16 %v115
    %v155 = vunpack.c.l.b16 %v116
    %v156 = vunpack.c.l.b16 %v117
    %v157 = vunpack.c.l.b16 %v118
    %v158 = vunpack.c.l.b16 %v119
    %v159 = vunpack.c.l.b16 %v120
    %v160 = vunpack.c.l.b16 %v121
    %v161 = vunpack.c.l.b16 %v122
    %v162 = vunpack.c.l.b16 %v123
    %v163 = vunpack.c.l.b16 %v124
    %v164 = vunpack.c.l.b16 %v125
    %v165 = vunpack.c.l.b16 %v126
    %v166 = vunpack.c.l.b16 %v127
    %v167 = vpack.c.b16 %v152, %v151
    %v168 = vpack.c.b16 %v154, %v153
    %v169 = vpack.c.b16 %v156, %v155
    %v170 = vpack.c.b16 %v158, %v157
    %v171 = vpack.c.b16 %v160, %v159
    %v172 = vpack.c.b16 %v162, %v161
    %v173 = vpack.c.b16 %v164, %v163
    %v174 = vpack.c.b16 %v166, %v165
    %183 = vmatprep.subr.bf16.mxu0 0
    %184 = vmatpush1.bf16.msra.mxu0 %v174
    %185 = vmatprep.subr.bf16.mxu0 0
    %186 = vmatpush1.bf16.msra.mxu0 %v173
    %187 = vmatprep.subr.bf16.mxu0 0
    %188 = vmatpush1.bf16.msra.mxu0 %v172
    %189 = vmatprep.subr.bf16.mxu0 0
    %190 = vmatpush1.bf16.msra.mxu0 %v171
    %191 = vmatprep.subr.bf16.mxu0 0
    %192 = vmatpush1.bf16.msra.mxu0 %v170
    %193 = vmatprep.subr.bf16.mxu0 0
    %194 = vmatpush1.bf16.msra.mxu0 %v169
    %195 = vmatprep.subr.bf16.mxu0 0
    %196 = vmatpush1.bf16.msra.mxu0 %v168
    %197 = vmatprep.subr.bf16.mxu0 0
    %198 = vmatpush1.bf16.msra.mxu0 %v167
    %199 = vmatprep.subr.bf16.mxu0 0
    %200 = vmatpush2.bf16.msra.mxu0 0
    %201 = vmatprep.subr.bf16.mxu0 0
    %202 = vmatpush2.bf16.msra.mxu0 0
    %203 = vmatprep.subr.bf16.mxu0 0
    %204 = vmatpush2.bf16.msra.mxu0 0
    %205 = vmatprep.subr.bf16.mxu0 0
    %206 = vmatpush2.bf16.msra.mxu0 0
    %207 = vmatprep.subr.bf16.mxu0 0
    %208 = vmatpush2.bf16.msra.mxu0 0
    %209 = vmatprep.subr.bf16.mxu0 0
    %210 = vmatpush2.bf16.msra.mxu0 0
    %211 = vmatprep.subr.bf16.mxu0 0
    %212 = vmatpush2.bf16.msra.mxu0 0
    %213 = vmatprep.subr.bf16.mxu0 0
    %214 = vmatpush2.bf16.msra.mxu0 0
    %215 = vmatprep.mubr.bf16.mxu0 0
    %216 = vmatmul.mubr.bf16.gmra.mxu0 %v111
    %v217 = vpop.f32.mrf.mxu0
    %v218 = vadd.f32 %v133, %v217
    %v219 = vpop.f32.mrf.mxu0
    %v220 = vpop.f32.mrf.mxu0
    %v221 = vpop.f32.mrf.mxu0
    %222 = vdwg.mxu0
    %v223 = vmax.f32 %v218, 0.0
    %v224 = vpack.c.bf16 %v223, %v223
    %v225 = vld [vmem:[%s5] sm:$0xf]
    %v226 = vld [vmem:[%s5 + $0x4] sm:$0xf]
    %v227 = vld [vmem:[%s5 + $0x8] sm:$0xf]
    %v228 = vld [vmem:[%s5 + $0xc] sm:$0xf]
    %v229 = vld [vmem:[%s5 + $0x10] sm:$0xf]
    %v230 = vld [vmem:[%s5 + $0x14] sm:$0xf]
    %v231 = vld [vmem:[%s5 + $0x18] sm:$0xf]
    %v232 = vld [vmem:[%s5 + $0x1c] sm:$0xf]
    %v233 = vld [vmem:[%s5 + $0x20] sm:$0xf]
    %v234 = vld [vmem:[%s5 + $0x24] sm:$0xf]
    %v235 = vld [vmem:[%s5 + $0x28] sm:$0xf]
    %v236 = vld [vmem:[%s5 + $0x2c] sm:$0xf]
    %v237 = vld [vmem:[%s5 + $0x30] sm:$0xf]
    %v238 = vld [vmem:[%s5 + $0x34] sm:$0xf]
    %v239 = vld [vmem:[%s5 + $0x38] sm:$0xf]
    %v240 = vld [vmem:[%s5 + $0x3c] sm:$0xf]
    %v241 = vld [vmem:[%s6] sm:$0x1]
    %v243 = vlaneseq
    %v244 = vshrl.u32 %v243, 7
    %v245 = vsub.s32 0, %v244
    %v246 = vrot.slane %v241, %v245
    %v264 = vunpack.c.l.b16 %v225
    %v265 = vunpack.c.l.b16 %v226
    %v266 = vunpack.c.l.b16 %v227
    %v267 = vunpack.c.l.b16 %v228
    %v268 = vunpack.c.l.b16 %v229
    %v269 = vunpack.c.l.b16 %v230
    %v270 = vunpack.c.l.b16 %v231
    %v271 = vunpack.c.l.b16 %v232
    %v272 = vunpack.c.l.b16 %v233
    %v273 = vunpack.c.l.b16 %v234
    %v274 = vunpack.c.l.b16 %v235
    %v275 = vunpack.c.l.b16 %v236
    %v276 = vunpack.c.l.b16 %v237
    %v277 = vunpack.c.l.b16 %v238
    %v278 = vunpack.c.l.b16 %v239
    %v279 = vunpack.c.l.b16 %v240
    %v280 = vpack.c.b16 %v265, %v264
    %v281 = vpack.c.b16 %v267, %v266
    %v282 = vpack.c.b16 %v269, %v268
    %v283 = vpack.c.b16 %v271, %v270
    %v284 = vpack.c.b16 %v273, %v272
    %v285 = vpack.c.b16 %v275, %v274
    %v286 = vpack.c.b16 %v277, %v276
    %v287 = vpack.c.b16 %v279, %v278
    %296 = vmatprep.subr.bf16.mxu0 0
    %297 = vmatpush1.bf16.msra.mxu0 %v287
    %298 = vmatprep.subr.bf16.mxu0 0
    %299 = vmatpush1.bf16.msra.mxu0 %v286
    %300 = vmatprep.subr.bf16.mxu0 0
    %301 = vmatpush1.bf16.msra.mxu0 %v285
    %302 = vmatprep.subr.bf16.mxu0 0
    %303 = vmatpush1.bf16.msra.mxu0 %v284
    %304 = vmatprep.subr.bf16.mxu0 0
    %305 = vmatpush1.bf16.msra.mxu0 %v283
    %306 = vmatprep.subr.bf16.mxu0 0
    %307 = vmatpush1.bf16.msra.mxu0 %v282
    %308 = vmatprep.subr.bf16.mxu0 0
    %309 = vmatpush1.bf16.msra.mxu0 %v281
    %310 = vmatprep.subr.bf16.mxu0 0
    %311 = vmatpush1.bf16.msra.mxu0 %v280
    %312 = vmatprep.subr.bf16.mxu0 0
    %313 = vmatpush2.bf16.msra.mxu0 0
    %314 = vmatprep.subr.bf16.mxu0 0
    %315 = vmatpush2.bf16.msra.mxu0 0
    %316 = vmatprep.subr.bf16.mxu0 0
    %317 = vmatpush2.bf16.msra.mxu0 0
    %318 = vmatprep.subr.bf16.mxu0 0
    %319 = vmatpush2.bf16.msra.mxu0 0
    %320 = vmatprep.subr.bf16.mxu0 0
    %321 = vmatpush2.bf16.msra.mxu0 0
    %322 = vmatprep.subr.bf16.mxu0 0
    %323 = vmatpush2.bf16.msra.mxu0 0
    %324 = vmatprep.subr.bf16.mxu0 0
    %325 = vmatpush2.bf16.msra.mxu0 0
    %326 = vmatprep.subr.bf16.mxu0 0
    %327 = vmatpush2.bf16.msra.mxu0 0
    %328 = vmatprep.mubr.bf16.mxu0 0
    %329 = vmatmul.mubr.bf16.gmra.mxu0 %v224
    %v330 = vpop.f32.mrf.mxu0
    %v331 = vadd.f32 %v246, %v330
    %v332 = vpop.f32.mrf.mxu0
    %v333 = vpop.f32.mrf.mxu0
    %v334 = vpop.f32.mrf.mxu0
    %335 = vdwg.mxu0
    %v336 = vsel %vm62, %v331, -inf
    %337 = vmax.xlane.f32.xlu0 %v336
    %v338 = vpop.xlane.xlu0 %337
    %v339 = vsub.f32 %v331, %v338
    %v340 = vmul.f32 %v339, 1.442695
    %v341 = vpow.pop %v340
    %v342 = vsel %vm62, %v341, 0.0
    %343 = vadd.xlane.f32.xlu0 %v342
    %v344 = vpop.xlane.xlu0 %343
    %v345 = vrcp.pop %v344
    %v346 = vmul.f32 %v341, %v345
    %347 = vst.msk [vmem:[#allocation7] sm:$0xff] %vm62, %v346
    // Predicated region
    $region38: #{tpu_custom_call.1} parent=1 // pred_check
      _
    $region39: #{tpu_custom_call.1} parent=1 // pred_check_branch
      %349 = sbr.rel (0) target = $region41
    $region40: #{tpu_custom_call.1} parent=1 // pred_region
      %s351 = ssub.s32 128, 128
      %352 = vsyncadd [#allocation4], %s351
      %s354 = sshll.u32 [#allocation7], 4
      %s355 = int_to_ptr.vmem [resolvable:$true] %s354
      %357 = dma.vmem_to_hbm [thread:$0]  %s355, 128, %s7, [#allocation4]
    $region41: #{tpu_custom_call.1} parent=1 // pred_fallthru
      _
    // Predicated region
    $region42: #{tpu_custom_call.1} parent=1 // pred_check
      _
    $region43: #{tpu_custom_call.1} parent=1 // pred_check_branch
      %359 = sbr.rel (0) target = $region45
    $region44: #{tpu_custom_call.1} parent=1 // pred_region
      %360 = dma.done [#allocation4], 128
    $region45: #{tpu_custom_call.1} parent=1 // pred_fallthru
      _
    %361 = vsyncpa [#allocation3], 1
    %362 = vsyncpa [#allocation6], 1
    %363 = vsyncpa [#allocation4], 1

</llo_original>
